<compile_context>
chip_gen: v5e
topology: v5e:2x2
jax: 0.10.0
libtpu: 0.0.40
codegen_flags: <defaults>
</compile_context>

<pallas_src>
import functools

import jax
import jax.numpy as jnp
from jax.experimental import pallas as pl
from jax.experimental.pallas import tpu as pltpu


def _cumloss_kernel(x_ref, t_ref, part_ref, *, nc, hw, tb, eps):
    i = pl.program_id(0)

    x = x_ref[...].astype(jnp.float32)   # (TB, HWp) logits
    t = t_ref[...].astype(jnp.float32)   # (TB, HWp) targets

    # Validity mask: columns >= hw are lane padding; rows >= nc are slice padding.
    col = jax.lax.broadcasted_iota(jnp.int32, x.shape, 1)
    row = jax.lax.broadcasted_iota(jnp.int32, x.shape, 0) + i * tb
    mask = jnp.logical_and(col < hw, row < nc)

    s = jax.nn.sigmoid(x)                 # single sigmoid, reused for BCE below
    p = jnp.where(mask, s, 0.0)
    tm = jnp.where(mask, t, 0.0)

    # Per-slice (per-row) dice / iou pieces.
    prod_row = jnp.sum(p * tm, axis=-1, keepdims=True)    # (TB, 1)
    setsum_row = jnp.sum(p + tm, axis=-1, keepdims=True)  # (TB, 1)

    inter = 2.0 * prod_row
    setsum_d = jnp.where(setsum_row == 0.0, inter, setsum_row)
    dice = inter / (setsum_d + eps)        # 0 for fully-padded rows
    iou = prod_row / (setsum_row + eps)    # 0 for fully-padded rows

    # Numerically stable BCE-with-logits, reusing the sigmoid:
    #   log(1 + exp(-|x|)) = -log(sigmoid(x))      if x >= 0
    #                        -log(1 - sigmoid(x))  if x <  0
    log1pexp = -jnp.log(jnp.where(x >= 0.0, s, 1.0 - s))
    bce_el = jnp.where(mask, jnp.maximum(x, 0.0) - x * tm + log1pexp, 0.0)

    dice_sum = jnp.sum(dice)
    iou_sum = jnp.sum(iou)
    bce_sum = jnp.sum(bce_el)

    # Lane-dense partial output block: lane 0 = dice, 1 = iou, 2 = bce.
    lane = jax.lax.broadcasted_iota(jnp.int32, part_ref.shape, 2)
    part_ref[...] = jnp.where(
        lane == 0,
        dice_sum,
        jnp.where(lane == 1, iou_sum, jnp.where(lane == 2, bce_sum, 0.0)),
    ).astype(jnp.float32)


def cum_loss(logits, target, core_loss: str = "dice"):
    """Pallas-TPU implementation of CumLoss.forward (returns a scalar)."""
    assert logits.shape == target.shape
    assert core_loss in ("dice", "iou")
    N, C, H, W = logits.shape
    NC, HW = N * C, H * W

    # Keep native dtypes; only flatten (free) and pad to lane-dense layout.
    x = logits.reshape(NC, HW)
    t = target.reshape(NC, HW)

    HWp = ((HW + 127) // 128) * 128
    if HWp != HW:
        x = jnp.pad(x, ((0, 0), (0, HWp - HW)))
        t = jnp.pad(t, ((0, 0), (0, HWp - HW)))

    # Slices per block: target ~2 MiB per input block (fits 2 inputs x 2 pipeline
    # buffers inside every generation's scoped VMEM), multiple of 8 sublanes.
    bpe = max(jnp.dtype(x.dtype).itemsize, jnp.dtype(t.dtype).itemsize)
    tb = (2 * 1024 * 1024) // (HWp * bpe)
    tb = max(8, (tb // 8) * 8)
    tb = min(tb, ((NC + 7) // 8) * 8)

    NCp = pl.cdiv(NC, tb) * tb
    if NCp != NC:
        x = jnp.pad(x, ((0, NCp - NC), (0, 0)))
        t = jnp.pad(t, ((0, NCp - NC), (0, 0)))
    num_blocks = NCp // tb

    kernel = functools.partial(_cumloss_kernel, nc=NC, hw=HW, tb=tb, eps=1e-9)

    parts = pl.pallas_call(
        kernel,
        out_shape=jax.ShapeDtypeStruct((num_blocks, 8, 128), jnp.float32),
        grid_spec=pl.GridSpec(
            grid=(num_blocks,),
            in_specs=[
                pl.BlockSpec((tb, HWp), lambda i: (i, 0)),
                pl.BlockSpec((tb, HWp), lambda i: (i, 0)),
            ],
            out_specs=pl.BlockSpec((1, 8, 128), lambda i: (i, 0, 0)),
        ),
        compiler_params=pltpu.CompilerParams(
            dimension_semantics=("parallel",),
            vmem_limit_bytes=64 * 1024 * 1024,
        ),
    )(x, t)

    # Tiny epilogue in plain JAX (tree-reduced across blocks).
    dice_sum = jnp.sum(parts[:, 0, 0])
    iou_sum = jnp.sum(parts[:, 0, 1])
    bce_sum = jnp.sum(parts[:, 0, 2])

    dice_mean = dice_sum / NC
    iou_mean = iou_sum / NC
    bce_mean = bce_sum / (NC * HW)

    core = (1.0 - dice_mean) if core_loss == "dice" else (1.0 - iou_mean)
    return core * 0.5 + bce_mean * 0.5


def _cum_loss_ref(logits, target, core_loss: str = "dice"):
    """Pure-JAX reference mirroring the PyTorch module."""
    eps = 1e-9
    x = logits.astype(jnp.float32)
    t = target.astype(jnp.float32)
    p = jax.nn.sigmoid(x)

    # Dice (reduce_batch_first=False, 4-D input -> sum over (-1, -2)).
    inter = 2.0 * jnp.sum(p * t, axis=(-1, -2))
    ssum = jnp.sum(p + t, axis=(-1, -2))
    ssum_d = jnp.where(ssum == 0.0, inter, ssum)
    loss_dice = 1.0 - jnp.mean(inter / (ssum_d + eps))

    # IOU.
    union = jnp.sum(p + t, axis=(-1, -2))
    isect = jnp.sum(p * t, axis=(-1, -2))
    loss_iou = 1.0 - jnp.mean(isect / (union + eps))

    # BCE with logits, mean reduction.
    bce = jnp.mean(
        jnp.maximum(x, 0.0) - x * t + jnp.log(1.0 + jnp.exp(-jnp.abs(x)))
    )

    core = loss_dice if core_loss == "dice" else loss_iou
    return core * 0.5 + bce * 0.5


if __name__ == "__main__":
    key = jax.random.PRNGKey(0)
    k1, k2, k3, k4 = jax.random.split(key, 4)

    # Case 1: lane-aligned spatial dims, f32 logits, core_loss="dice".
    N, C, H, W = 2, 4, 16, 16
    logits = jax.random.normal(k1, (N, C, H, W), dtype=jnp.float32)
    target = (jax.random.uniform(k2, (N, C, H, W)) > 0.5).astype(jnp.float32)
    loss = jax.block_until_ready(cum_loss(logits, target, core_loss="dice"))
    ref = _cum_loss_ref(logits, target, core_loss="dice")
    assert jnp.allclose(loss, ref, rtol=1e-5, atol=1e-5), (loss, ref)

    # Case 2: non-128-multiple H*W and non-multiple-of-8 N*C (exercises
    # lane/row padding paths), bf16 logits, core_loss="iou".
    N2, C2, H2, W2 = 2, 3, 10, 10
    logits2 = jax.random.normal(k3, (N2, C2, H2, W2), dtype=jnp.bfloat16)
    target2 = (jax.random.uniform(k4, (N2, C2, H2, W2)) > 0.5).astype(jnp.float32)
    loss2 = jax.block_until_ready(cum_loss(logits2, target2, core_loss="iou"))
    ref2 = _cum_loss_ref(logits2, target2, core_loss="iou")
    assert jnp.allclose(loss2, ref2, rtol=1e-4, atol=1e-4), (loss2, ref2)

    print("KERNEL_OK")
</pallas_src>

<mosaic_0001>
module attributes {stable_mosaic.version = 11 : i64} {
  func.func @_cumloss_kernel(%arg0: i32, %arg1: memref<8x256xf32, #tpu.memory_space<vmem>>, %arg2: memref<8x256xf32, #tpu.memory_space<vmem>>, %arg3: memref<1x8x128xf32, #tpu.memory_space<vmem>>) attributes {dimension_semantics = [#tpu.dimension_semantics<parallel>], iteration_bounds = array<i64: 1>, scalar_prefetch = 0 : i64, scratch_operands = 0 : i64, tpu.core_type = #tpu.core_type<tc>, window_params = [{transform_indices = @transform_0, window_bounds = array<i64: 8, 256>}, {transform_indices = @transform_1, window_bounds = array<i64: 8, 256>}, {transform_indices = @transform_2, window_bounds = array<i64: 1, 8, 128>}]} {
    %c0 = arith.constant 0 : index
    %c0_0 = arith.constant 0 : index
    %0 = vector.load %arg1[%c0, %c0_0] : memref<8x256xf32, #tpu.memory_space<vmem>>, vector<8x256xf32>
    %c0_1 = arith.constant 0 : index
    %c0_2 = arith.constant 0 : index
    %1 = vector.load %arg2[%c0_1, %c0_2] : memref<8x256xf32, #tpu.memory_space<vmem>>, vector<8x256xf32>
    %2 = tpu.iota {dimensions = array<i32: 1>} : vector<8x256xi32>
    %3 = tpu.iota {dimensions = array<i32: 0>} : vector<8x256xi32>
    %c8_i32 = arith.constant 8 : i32
    %4 = arith.muli %arg0, %c8_i32 : i32
    %5 = vector.broadcast %4 : i32 to vector<8x256xi32>
    %6 = arith.addi %3, %5 : vector<8x256xi32>
    %c256_i32 = arith.constant 256 : i32
    %7 = vector.broadcast %c256_i32 : i32 to vector<8x256xi32>
    %8 = arith.cmpi slt, %2, %7 : vector<8x256xi32>
    %c8_i32_3 = arith.constant 8 : i32
    %9 = vector.broadcast %c8_i32_3 : i32 to vector<8x256xi32>
    %10 = arith.cmpi slt, %6, %9 : vector<8x256xi32>
    %11 = arith.andi %8, %10 : vector<8x256xi1>
    %12 = arith.negf %0 : vector<8x256xf32>
    %13 = math.exp %12 : vector<8x256xf32>
    %cst = arith.constant 1.000000e+00 : f32
    %14 = vector.broadcast %cst : f32 to vector<8x256xf32>
    %15 = arith.addf %14, %13 : vector<8x256xf32>
    %16 = arith.divf %14, %15 : vector<8x256xf32>
    %cst_4 = arith.constant 0.000000e+00 : f32
    %17 = vector.broadcast %cst_4 : f32 to vector<8x256xf32>
    %18 = arith.select %11, %16, %17 : vector<8x256xi1>, vector<8x256xf32>
    %cst_5 = arith.constant 0.000000e+00 : f32
    %19 = vector.broadcast %cst_5 : f32 to vector<8x256xf32>
    %20 = arith.select %11, %1, %19 : vector<8x256xi1>, vector<8x256xf32>
    %21 = arith.mulf %18, %20 : vector<8x256xf32>
    %cst_6 = arith.constant dense<0.000000e+00> : vector<8xf32>
    %22 = vector.multi_reduction <add>, %21, %cst_6 [1] : vector<8x256xf32> to vector<8xf32>
    %23 = vector.shape_cast %22 : vector<8xf32> to vector<8x1xf32>
    %24 = arith.addf %18, %20 : vector<8x256xf32>
    %cst_7 = arith.constant dense<0.000000e+00> : vector<8xf32>
    %25 = vector.multi_reduction <add>, %24, %cst_7 [1] : vector<8x256xf32> to vector<8xf32>
    %26 = vector.shape_cast %25 : vector<8xf32> to vector<8x1xf32>
    %cst_8 = arith.constant 2.000000e+00 : f32
    %27 = vector.broadcast %cst_8 : f32 to vector<8x1xf32>
    %28 = arith.mulf %27, %23 : vector<8x1xf32>
    %cst_9 = arith.constant 0.000000e+00 : f32
    %29 = vector.broadcast %cst_9 : f32 to vector<8x1xf32>
    %30 = arith.cmpf oeq, %26, %29 : vector<8x1xf32>
    %31 = arith.select %30, %28, %26 : vector<8x1xi1>, vector<8x1xf32>
    %cst_10 = arith.constant 9.99999971E-10 : f32
    %32 = vector.broadcast %cst_10 : f32 to vector<8x1xf32>
    %33 = arith.addf %31, %32 : vector<8x1xf32>
    %34 = arith.divf %28, %33 : vector<8x1xf32>
    %cst_11 = arith.constant 9.99999971E-10 : f32
    %35 = vector.broadcast %cst_11 : f32 to vector<8x1xf32>
    %36 = arith.addf %26, %35 : vector<8x1xf32>
    %37 = arith.divf %23, %36 : vector<8x1xf32>
    %cst_12 = arith.constant 0.000000e+00 : f32
    %38 = vector.broadcast %cst_12 : f32 to vector<8x256xf32>
    %39 = arith.cmpf oge, %0, %38 : vector<8x256xf32>
    %cst_13 = arith.constant 1.000000e+00 : f32
    %40 = vector.broadcast %cst_13 : f32 to vector<8x256xf32>
    %41 = arith.subf %40, %16 : vector<8x256xf32>
    %42 = arith.select %39, %16, %41 : vector<8x256xi1>, vector<8x256xf32>
    %43 = math.log %42 : vector<8x256xf32>
    %cst_14 = arith.constant 0.000000e+00 : f32
    %44 = vector.broadcast %cst_14 : f32 to vector<8x256xf32>
    %45 = arith.subf %44, %43 : vector<8x256xf32>
    %cst_15 = arith.constant 0.000000e+00 : f32
    %46 = vector.broadcast %cst_15 : f32 to vector<8x256xf32>
    %47 = arith.maximumf %0, %46 : vector<8x256xf32>
    %48 = arith.mulf %0, %20 : vector<8x256xf32>
    %49 = arith.subf %47, %48 : vector<8x256xf32>
    %50 = arith.addf %49, %45 : vector<8x256xf32>
    %cst_16 = arith.constant 0.000000e+00 : f32
    %51 = vector.broadcast %cst_16 : f32 to vector<8x256xf32>
    %52 = arith.select %11, %50, %51 : vector<8x256xi1>, vector<8x256xf32>
    %53 = vector.shape_cast %34 : vector<8x1xf32> to vector<1x8x1xf32>
    %cst_17 = arith.constant dense<0.000000e+00> : vector<1xf32>
    %54 = vector.multi_reduction <add>, %53, %cst_17 [1, 2] : vector<1x8x1xf32> to vector<1xf32>
    %55 = vector.shape_cast %54 : vector<1xf32> to vector<1x1x1xf32>
    %56 = vector.extract %55[0, 0, 0] : f32 from vector<1x1x1xf32>
    %57 = vector.shape_cast %37 : vector<8x1xf32> to vector<1x8x1xf32>
    %cst_18 = arith.constant dense<0.000000e+00> : vector<1xf32>
    %58 = vector.multi_reduction <add>, %57, %cst_18 [1, 2] : vector<1x8x1xf32> to vector<1xf32>
    %59 = vector.shape_cast %58 : vector<1xf32> to vector<1x1x1xf32>
    %60 = vector.extract %59[0, 0, 0] : f32 from vector<1x1x1xf32>
    %61 = vector.shape_cast %52 : vector<8x256xf32> to vector<1x8x256xf32>
    %cst_19 = arith.constant dense<0.000000e+00> : vector<1xf32>
    %62 = vector.multi_reduction <add>, %61, %cst_19 [1, 2] : vector<1x8x256xf32> to vector<1xf32>
    %63 = vector.shape_cast %62 : vector<1xf32> to vector<1x1x1xf32>
    %64 = vector.extract %63[0, 0, 0] : f32 from vector<1x1x1xf32>
    %65 = tpu.iota {dimensions = array<i32: 2>} : vector<1x8x128xi32>
    %c0_i32 = arith.constant 0 : i32
    %66 = vector.broadcast %c0_i32 : i32 to vector<1x8x128xi32>
    %67 = arith.cmpi eq, %65, %66 : vector<1x8x128xi32>
    %c1_i32 = arith.constant 1 : i32
    %68 = vector.broadcast %c1_i32 : i32 to vector<1x8x128xi32>
    %69 = arith.cmpi eq, %65, %68 : vector<1x8x128xi32>
    %c2_i32 = arith.constant 2 : i32
    %70 = vector.broadcast %c2_i32 : i32 to vector<1x8x128xi32>
    %71 = arith.cmpi eq, %65, %70 : vector<1x8x128xi32>
    %cst_20 = arith.constant 0.000000e+00 : f32
    %72 = vector.broadcast %64 : f32 to vector<1x8x128xf32>
    %73 = vector.broadcast %cst_20 : f32 to vector<1x8x128xf32>
    %74 = arith.select %71, %72, %73 : vector<1x8x128xi1>, vector<1x8x128xf32>
    %75 = vector.broadcast %60 : f32 to vector<1x8x128xf32>
    %76 = arith.select %69, %75, %74 : vector<1x8x128xi1>, vector<1x8x128xf32>
    %77 = vector.broadcast %56 : f32 to vector<1x8x128xf32>
    %78 = arith.select %67, %77, %76 : vector<1x8x128xi1>, vector<1x8x128xf32>
    %c0_21 = arith.constant 0 : index
    %c0_22 = arith.constant 0 : index
    %c0_23 = arith.constant 0 : index
    %79 = vector.load %arg3[%c0_21, %c0_22, %c0_23] : memref<1x8x128xf32, #tpu.memory_space<vmem>>, vector<1x8x128xf32>
    tpu.vector_store %arg3[%c0_21, %c0_22, %c0_23], %78 {strides = array<i32>} : memref<1x8x128xf32, #tpu.memory_space<vmem>>, vector<1x8x128xf32>,
    return
  }
  func.func @transform_0(%arg0: i32) -> (i32, i32) {
    %c0_i32 = arith.constant 0 : i32
    %c0_i32_0 = arith.constant 0 : i32
    return %arg0, %c0_i32 : i32, i32
  }
  func.func @transform_1(%arg0: i32) -> (i32, i32) {
    %c0_i32 = arith.constant 0 : i32
    %c0_i32_0 = arith.constant 0 : i32
    return %arg0, %c0_i32 : i32, i32
  }
  func.func @transform_2(%arg0: i32) -> (i32, i32, i32) {
    %c0_i32 = arith.constant 0 : i32
    %c0_i32_0 = arith.constant 0 : i32
    %c0_i32_1 = arith.constant 0 : i32
    return %arg0, %c0_i32, %c0_i32_0 : i32, i32, i32
  }
}

</mosaic_0001>

<llo_original>
// kernel: tpu_custom_call.1
$region0: #{tpu_custom_call.1}
  #allocation0 [shape = 'u32[]', space=smem, size = 0x4, offset = 0x4, fixed_abs, tag = 'smem constant byte address 0x4 - core index']
  #allocation1 [shape = 'u32[72,128]{1,0:T(1,128)}', space=vmem, size = 0x9000, scoped, tag = 'internal scratch']
  %s0 = inlined_call_operand.hbm [shape: f32[8,256], index: 0, kind: input, shape index: {}]
  %s1 = inlined_call_operand.hbm [shape: f32[8,256], index: 1, kind: input, shape index: {}]
  %s2 = inlined_call_operand.hbm [shape: f32[1,8,128], index: 2, kind: output, shape index: {}]
  %s3 = sld [smem:[#allocation0]]
  $region26: #{tpu_custom_call.1} parent=0
    _
  %s5 = ssub.s32 1, %s3
  %s6 = scalar_select 0, %s5, %s3
  $region1: #{tpu_custom_call.1} parent=0
    #allocation2 [shape = 'u8[8192]{0}', space=vmem, size = 0x2000, scoped, tag = 'input window, operand 0, single buffered']
    #allocation3 [shape = 's32[1]{0}', space=sflag, size = 0x4, scoped, tag = 'scoped memory for tpu_custom_call.1']
    #allocation4 [shape = 's32[1]{0}', space=sflag, size = 0x4, scoped, tag = 'scoped memory for tpu_custom_call.1']
    #allocation5 [shape = 'u8[8192]{0}', space=vmem, size = 0x2000, scoped, tag = 'input window, operand 1, single buffered']
    #allocation6 [shape = 's32[1]{0}', space=sflag, size = 0x4, scoped, tag = 'scoped memory for tpu_custom_call.1']
    #allocation7 [shape = 'u8[4096]{0}', space=vmem, size = 0x1000, scoped, tag = 'output window, operand 0, single buffered']
    %7 = vsyncpa [#allocation3], 0
    %8 = vsyncpa [#allocation6], 0
    %9 = vsyncpa [#allocation4], 0
    // Predicated region
    $region2: #{tpu_custom_call.1} parent=1 // pred_check
      _
    $region3: #{tpu_custom_call.1} parent=1 // pred_check_branch
      %11 = sbr.rel (0) target = $region5
    $region4: #{tpu_custom_call.1} parent=1 // pred_region
      %13 = vsyncadd [#allocation3], 0
      %s15 = sshll.u32 %s0, 4
      %s16 = int_to_ptr.hbm [resolvable:$true] %s15
      %s17 = sshll.u32 [#allocation2], 4
      %s18 = int_to_ptr.vmem [resolvable:$true] %s17
      %20 = dma.hbm_to_vmem [thread:$0]  %s16, 256, %s18, [#allocation3]
    $region5: #{tpu_custom_call.1} parent=1 // pred_fallthru
      _
    // Predicated region
    $region6: #{tpu_custom_call.1} parent=1 // pred_check
      _
    $region7: #{tpu_custom_call.1} parent=1 // pred_check_branch
      %22 = sbr.rel (0) target = $region9
    $region8: #{tpu_custom_call.1} parent=1 // pred_region
      %24 = vsyncadd [#allocation6], 0
      %s26 = sshll.u32 %s1, 4
      %s27 = int_to_ptr.hbm [resolvable:$true] %s26
      %s28 = sshll.u32 [#allocation5], 4
      %s29 = int_to_ptr.vmem [resolvable:$true] %s28
      %31 = dma.hbm_to_vmem [thread:$0]  %s27, 256, %s29, [#allocation6]
    $region9: #{tpu_custom_call.1} parent=1 // pred_fallthru
      _
    // Predicated region
    $region10: #{tpu_custom_call.1} parent=1 // pred_check
      _
    $region11: #{tpu_custom_call.1} parent=1 // pred_check_branch
      %33 = sbr.rel (0) target = $region13
    $region12: #{tpu_custom_call.1} parent=1 // pred_region
      %35 = dma.done [#allocation3], 256
    $region13: #{tpu_custom_call.1} parent=1 // pred_fallthru
      _
    // Predicated region
    $region14: #{tpu_custom_call.1} parent=1 // pred_check
      _
    $region15: #{tpu_custom_call.1} parent=1 // pred_check_branch
      %37 = sbr.rel (0) target = $region17
    $region16: #{tpu_custom_call.1} parent=1 // pred_region
      %39 = dma.done [#allocation6], 256
    $region17: #{tpu_custom_call.1} parent=1 // pred_fallthru
      _
    %v40 = vld [vmem:[#allocation2] sm:$0xff]
    %v41 = vld [vmem:[#allocation2 + $0x8] sm:$0xff]
    %v42 = vld [vmem:[#allocation5] sm:$0xff]
    %v43 = vld [vmem:[#allocation5 + $0x8] sm:$0xff]
    %v44 = vlaneseq
    %v45 = vand.u32 %v44, 127
    %v46 = vadd.s32 %v45, 128
    %v47 = vlaneseq
    %v48 = vshrl.u32 %v47, 7
    %s49 = smul.u32 0, 8
    %v50 = vstv %s49
    %v51 = vadd.s32 %v48, %v50
    %vm52 = vcmp.lt.s32.totalorder %v45, 256
    %vm53 = vcmp.lt.s32.totalorder %v46, 256
    %vm54 = vcmp.lt.s32.totalorder %v51, 8
    %vm55 = vmand %vm52, %vm54
    %vm56 = vmand %vm53, %vm54
    %v57 = vxor.u32 %v40, 2147483648
    %v58 = vxor.u32 %v41, 2147483648
    %v59 = vmul.f32 %v57, 1.442695
    %v60 = vpow.pop %v59
    %v61 = vmul.f32 %v58, 1.442695
    %v62 = vpow.pop %v61
    %v63 = vadd.f32 %v60, 1.0
    %v64 = vadd.f32 %v62, 1.0
    %v65 = vrcp.pop %v63
    %v66 = vmul.f32 %v63, %v65
    %v67 = vsub.f32 1.0, %v66
    %v68 = vmul.f32 %v65, %v67
    %v69 = vadd.f32 %v65, %v68
    %vm70 = vweird.f32 %v63
    %vm71 = vweird.f32 %v65
    %vm72 = vmor %vm70, %vm71
    %v73 = vsel %vm72, %v65, %v69
    %v74 = vand.u32 2147483647, %v63
    %vm75 = vcmp.eq.f32.partialorder %v74, 8.507059e+37
    %v76 = vand.u32 %v63, 2147483648
    %v77 = vor.u32 1.1754944e-38, %v76
    %v78 = vsel %vm75, %v77, %v73
    %v79 = vmul.f32 1.0, %v78
    %v80 = vrcp.pop %v64
    %v81 = vmul.f32 %v64, %v80
    %v82 = vsub.f32 1.0, %v81
    %v83 = vmul.f32 %v80, %v82
    %v84 = vadd.f32 %v80, %v83
    %vm85 = vweird.f32 %v64
    %vm86 = vweird.f32 %v80
    %vm87 = vmor %vm85, %vm86
    %v88 = vsel %vm87, %v80, %v84
    %v89 = vand.u32 2147483647, %v64
    %vm90 = vcmp.eq.f32.partialorder %v89, 8.507059e+37
    %v91 = vand.u32 %v64, 2147483648
    %v92 = vor.u32 1.1754944e-38, %v91
    %v93 = vsel %vm90, %v92, %v88
    %v94 = vmul.f32 1.0, %v93
    %v95 = vsel %vm55, %v79, 0.0
    %v96 = vsel %vm56, %v94, 0.0
    %v97 = vsel %vm55, %v42, 0.0
    %v98 = vsel %vm56, %v43, 0.0
    %v99 = vmul.f32 %v95, %v97
    %v100 = vmul.f32 %v96, %v98
    %v101 = vadd.f32 %v99, %v100
    %102 = vadd.xlane.f32.xlu0 %v101
    %v103 = vpop.xlane.xlu0 %102
    %v104 = vadd.f32 %v95, %v97
    %v105 = vadd.f32 %v96, %v98
    %v106 = vadd.f32 %v104, %v105
    %107 = vadd.xlane.f32.xlu0 %v106
    %v108 = vpop.xlane.xlu0 %107
    %v109 = vmul.f32 %v103, 2.0
    %vm110 = vcmp.eq.f32.partialorder %v108, 0.0
    %v111 = vsel %vm110, %v109, %v108
    %v112 = vadd.f32 %v111, 1e-09
    %v113 = vrcp.pop %v112
    %v114 = vmul.f32 %v112, %v113
    %v115 = vsub.f32 1.0, %v114
    %v116 = vmul.f32 %v113, %v115
    %v117 = vadd.f32 %v113, %v116
    %vm118 = vweird.f32 %v112
    %vm119 = vweird.f32 %v113
    %vm120 = vmor %vm118, %vm119
    %v121 = vsel %vm120, %v113, %v117
    %v122 = vand.u32 2147483647, %v112
    %vm123 = vcmp.eq.f32.partialorder %v122, 8.507059e+37
    %v124 = vand.u32 %v112, 2147483648
    %v125 = vor.u32 1.1754944e-38, %v124
    %v126 = vsel %vm123, %v125, %v121
    %v127 = vmul.f32 %v109, %v126
    %v128 = vadd.f32 %v108, 1e-09
    %v129 = vrcp.pop %v128
    %v130 = vmul.f32 %v128, %v129
    %v131 = vsub.f32 1.0, %v130
    %v132 = vmul.f32 %v129, %v131
    %v133 = vadd.f32 %v129, %v132
    %vm134 = vweird.f32 %v128
    %vm135 = vweird.f32 %v129
    %vm136 = vmor %vm134, %vm135
    %v137 = vsel %vm136, %v129, %v133
    %v138 = vand.u32 2147483647, %v128
    %vm139 = vcmp.eq.f32.partialorder %v138, 8.507059e+37
    %v140 = vand.u32 %v128, 2147483648
    %v141 = vor.u32 1.1754944e-38, %v140
    %v142 = vsel %vm139, %v141, %v137
    %v143 = vmul.f32 %v103, %v142
    %vm144 = vcmp.ge.f32.partialorder %v40, 0.0
    %vm145 = vcmp.ge.f32.partialorder %v41, 0.0
    %v146 = vsub.f32 1.0, %v79
    %v147 = vsub.f32 1.0, %v94
    %v148 = vsel %vm144, %v79, %v146
    %v149 = vsel %vm145, %v94, %v147
    %v150 = vlog2.pop %v148
    %v151 = vmul.f32 %v150, 0.6931472
    %v152 = vlog2.pop %v149
    %v153 = vmul.f32 %v152, 0.6931472
    %v154 = vsub.f32 0.0, %v151
    %v155 = vsub.f32 0.0, %v153
    %v156 = vmax.f32 %v40, 0.0
    %v157 = vmax.f32 %v41, 0.0
    %v158 = vmul.f32 %v40, %v97
    %v159 = vmul.f32 %v41, %v98
    %v160 = vsub.f32 %v156, %v158
    %v161 = vsub.f32 %v157, %v159
    %v162 = vadd.f32 %v160, %v154
    %v163 = vadd.f32 %v161, %v155
    %v164 = vsel %vm55, %v162, 0.0
    %v165 = vsel %vm56, %v163, 0.0
    %vm166 = vcmask 7168
    %v167 = vsel %vm166, %v127, 0.0
    %168 = vadd.xlane.f32.xlu0 %v167
    %v169 = vpop.xlane.xlu0 %168
    %v170 = vrot.slane %v169, 4
    %v171 = vadd.f32 %v169, %v170
    %v172 = vrot.slane %v171, 2
    %v173 = vadd.f32 %v171, %v172
    %v174 = vrot.slane %v173, 1
    %v175 = vadd.f32 %v173, %v174
    %s176 = vtos %v175
    %v177 = vsel %vm166, %v143, 0.0
    %178 = vadd.xlane.f32.xlu0 %v177
    %v179 = vpop.xlane.xlu0 %178
    %v180 = vrot.slane %v179, 4
    %v181 = vadd.f32 %v179, %v180
    %v182 = vrot.slane %v181, 2
    %v183 = vadd.f32 %v181, %v182
    %v184 = vrot.slane %v183, 1
    %v185 = vadd.f32 %v183, %v184
    %s186 = vtos %v185
    %v187 = vadd.f32 %v164, %v165
    %188 = vadd.xlane.f32.xlu0 %v187
    %v189 = vpop.xlane.xlu0 %188
    %v190 = vrot.slane %v189, 4
    %v191 = vadd.f32 %v189, %v190
    %v192 = vrot.slane %v191, 2
    %v193 = vadd.f32 %v191, %v192
    %v194 = vrot.slane %v193, 1
    %v195 = vadd.f32 %v193, %v194
    %s196 = vtos %v195
    %vm197 = vcmp.eq.s32.totalorder %v45, 0
    %vm198 = vcmp.eq.s32.totalorder %v45, 1
    %vm199 = vcmp.eq.s32.totalorder %v45, 2
    %v200 = vstv %s196
    %v201 = vsel %vm199, %v200, 0.0
    %v202 = vstv %s186
    %v203 = vsel %vm198, %v202, %v201
    %v204 = vstv %s176
    %v205 = vsel %vm197, %v204, %v203
    %206 = vst [vmem:[#allocation7] sm:$0xff] %v205
    // Predicated region
    $region18: #{tpu_custom_call.1} parent=1 // pred_check
      _
    $region19: #{tpu_custom_call.1} parent=1 // pred_check_branch
      %208 = sbr.rel (0) target = $region21
    $region20: #{tpu_custom_call.1} parent=1 // pred_region
      %210 = vsyncadd [#allocation4], 0
      %s212 = sshll.u32 [#allocation7], 4
      %s213 = int_to_ptr.vmem [resolvable:$true] %s212
      %s214 = sshll.u32 %s2, 4
      %s215 = int_to_ptr.hbm [resolvable:$true] %s214
      %217 = dma.vmem_to_hbm [thread:$0]  %s213, 128, %s215, [#allocation4]
    $region21: #{tpu_custom_call.1} parent=1 // pred_fallthru
      _
    // Predicated region
    $region22: #{tpu_custom_call.1} parent=1 // pred_check
      _
    $region23: #{tpu_custom_call.1} parent=1 // pred_check_branch
      %219 = sbr.rel (0) target = $region25
    $region24: #{tpu_custom_call.1} parent=1 // pred_region
      %221 = dma.done [#allocation4], 128
    $region25: #{tpu_custom_call.1} parent=1 // pred_fallthru
      _
    %222 = vsyncpa [#allocation3], 1
    %223 = vsyncpa [#allocation6], 1
    %224 = vsyncpa [#allocation4], 1

</llo_original>
